<compile_context>
chip_gen: v6e
topology: v6e:2x2x1
jax: 0.10.0
libtpu: 0.0.40
codegen_flags: <defaults>
</compile_context>

<pallas_src>
import jax
import jax.numpy as jnp
from jax.experimental import pallas as pl
from jax.experimental.pallas import tpu as pltpu

LANE = 128


def _mlp_kernel(x_ref, w1_ref, b1_ref, w2_ref, b2_ref, w3_ref, b3_ref, o_ref):
    xt = x_ref[...]                                   # (2, TB)  batch on lanes
    w1 = w1_ref[...]                                  # (H1, 2)  native torch layout

    # ---- Linear1 (in=2 -> H1) on the VPU ------------------------------------
    # K=2 is <2% MXU utilization; two broadcast-FMAs avoid the MXU push/pop.
    # xt rows broadcast over sublanes (nearly free); w1 columns broadcast over lanes.
    h = w1[:, 0:1] * xt[0:1, :] + w1[:, 1:2] * xt[1:2, :] + b1_ref[...]
    h = jnp.maximum(h, 0.0)                           # (H1, TB)

    # ---- Linear2 (H1 -> H1) on the MXU ---------------------------------------
    h = jnp.dot(w2_ref[...], h, preferred_element_type=jnp.float32) + b2_ref[...]
    h = jnp.maximum(h, 0.0)                           # (H1, TB)

    # ---- Linear3 (H1 -> 2) on the MXU, lane-dense (2, TB) store --------------
    o_ref[...] = (jnp.dot(w3_ref[...], h, preferred_element_type=jnp.float32)
                  + b3_ref[...])                      # (2, TB)


def prepare_params(params):
    """One-time layout prep (hoist out of the forward / training step).

    Weights stay in native torch (out, in) layout; only biases become columns.
    """
    f32 = jnp.float32
    return {
        "w1": params["w1"].astype(f32),               # (H1, 2)
        "w2": params["w2"].astype(f32),               # (H1, H1)
        "w3": params["w3"].astype(f32),               # (2, H1)
        "b1": params["b1"].astype(f32).reshape(-1, 1),  # (H1, 1)
        "b2": params["b2"].astype(f32).reshape(-1, 1),  # (H1, 1)
        "b3": params["b3"].astype(f32).reshape(-1, 1),  # (2, 1)
    }


def two_layer_net(x, prep, *, tb=4096, vmem_limit_bytes=None):
    """Fused TwoLayerNet forward.  x: [B, 2] float32 -> [B, 2] float32."""
    B = x.shape[0]
    H1 = prep["w1"].shape[0]

    # ---- Batch tiling --------------------------------------------------------
    # TB is a multiple of 128 (lane-dense blocks).  Clamp so the grid has >=2
    # steps whenever the batch can be split -> v7x megacore gets both cores busy.
    tb = max(LANE, pl.cdiv(tb, LANE) * LANE)
    b_lanes = pl.cdiv(B, LANE) * LANE
    TB = min(tb, b_lanes)
    if b_lanes >= 2 * LANE and b_lanes // TB < 2:
        TB = pl.cdiv(b_lanes // 2, LANE) * LANE
    B_pad = pl.cdiv(B, TB) * TB
    grid = (B_pad // TB,)

    # Transposed, zero-padded input (2, B_pad): one tiny (8 B/row) layout copy.
    xT = x.astype(jnp.float32).T
    if B_pad != B:
        xT = jnp.pad(xT, ((0, 0), (0, B_pad - B)))

    resident = lambda i: (0, 0)  # weights/biases: same block every step -> stay in VMEM

    cp_kwargs = dict(dimension_semantics=("parallel",))
    if vmem_limit_bytes is not None:
        cp_kwargs["vmem_limit_bytes"] = vmem_limit_bytes

    outT = pl.pallas_call(
        _mlp_kernel,
        out_shape=jax.ShapeDtypeStruct((2, B_pad), jnp.float32),
        grid=grid,
        in_specs=[
            pl.BlockSpec((2, TB), lambda i: (0, i)),   # xT: pipelined over batch lanes
            pl.BlockSpec((H1, 2), resident),           # w1
            pl.BlockSpec((H1, 1), resident),           # b1 (column)
            pl.BlockSpec((H1, H1), resident),          # w2
            pl.BlockSpec((H1, 1), resident),           # b2 (column)
            pl.BlockSpec((2, H1), resident),           # w3
            pl.BlockSpec((2, 1), resident),            # b3 (column)
        ],
        out_specs=pl.BlockSpec((2, TB), lambda i: (0, i)),  # lane-dense, no padding
        compiler_params=pltpu.CompilerParams(**cp_kwargs),
    )(xT, prep["w1"], prep["b1"], prep["w2"], prep["b2"], prep["w3"], prep["b3"])

    return outT[:, :B].T


def init_params(key, H1):
    """Deterministic init mimicking torch.nn.Linear (weight (out,in), bias (out,))."""
    ks = jax.random.split(key, 6)

    def linear(kw, kb, fan_in, fan_out):
        bound = 1.0 / (fan_in ** 0.5)
        w = jax.random.uniform(kw, (fan_out, fan_in), jnp.float32, -bound, bound)
        b = jax.random.uniform(kb, (fan_out,), jnp.float32, -bound, bound)
        return w, b

    w1, b1 = linear(ks[0], ks[1], 2, H1)
    w2, b2 = linear(ks[2], ks[3], H1, H1)
    w3, b3 = linear(ks[4], ks[5], H1, 2)
    return {"w1": w1, "b1": b1, "w2": w2, "b2": b2, "w3": w3, "b3": b3}


def reference(x, p):
    h2 = jnp.maximum(x @ p["w1"].T + p["b1"], 0.0)
    h3 = jnp.maximum(h2 @ p["w2"].T + p["b2"], 0.0)
    return h3 @ p["w3"].T + p["b3"]


if __name__ == "__main__":
    key = jax.random.PRNGKey(0)
    k_x, k_p = jax.random.split(key)

    B, H1 = 8, 32
    x = jax.random.normal(k_x, (B, 2), jnp.float32)
    params = init_params(k_p, H1)
    prep = prepare_params(params)            # one-time layout prep, outside the forward

    out = jax.block_until_ready(two_layer_net(x, prep))
    ref = reference(x, params)
    assert out.shape == (B, 2)
    assert jnp.allclose(out, ref, atol=1e-5, rtol=1e-5), "mismatch vs reference"

    # Exercise the multi-tile path (non-divisible batch, >=2 grid steps).
    B2 = 1000
    x2 = jax.random.normal(k_x, (B2, 2), jnp.float32)
    out2 = jax.block_until_ready(two_layer_net(x2, prep))
    ref2 = reference(x2, params)
    assert out2.shape == (B2, 2)
    assert jnp.allclose(out2, ref2, atol=1e-4, rtol=1e-4), "mismatch vs reference (tiled)"

    print("KERNEL_OK")
</pallas_src>

<mosaic_0001>
module attributes {stable_mosaic.version = 11 : i64} {
  func.func @_mlp_kernel(%arg0: i32, %arg1: memref<2x128xf32, #tpu.memory_space<vmem>>, %arg2: memref<32x2xf32, #tpu.memory_space<vmem>>, %arg3: memref<32x1xf32, #tpu.memory_space<vmem>>, %arg4: memref<32x32xf32, #tpu.memory_space<vmem>>, %arg5: memref<32x1xf32, #tpu.memory_space<vmem>>, %arg6: memref<2x32xf32, #tpu.memory_space<vmem>>, %arg7: memref<2x1xf32, #tpu.memory_space<vmem>>, %arg8: memref<2x128xf32, #tpu.memory_space<vmem>>) attributes {dimension_semantics = [#tpu.dimension_semantics<parallel>], iteration_bounds = array<i64: 1>, scalar_prefetch = 0 : i64, scratch_operands = 0 : i64, tpu.core_type = #tpu.core_type<tc>, window_params = [{transform_indices = @transform_0, window_bounds = array<i64: 2, 128>}, {pipeline_mode = #tpu.pipeline_mode<synchronous>, transform_indices = @transform_1, window_bounds = array<i64: 32, 2>}, {pipeline_mode = #tpu.pipeline_mode<synchronous>, transform_indices = @transform_2, window_bounds = array<i64: 32, 1>}, {pipeline_mode = #tpu.pipeline_mode<synchronous>, transform_indices = @transform_3, window_bounds = array<i64: 32, 32>}, {pipeline_mode = #tpu.pipeline_mode<synchronous>, transform_indices = @transform_4, window_bounds = array<i64: 32, 1>}, {pipeline_mode = #tpu.pipeline_mode<synchronous>, transform_indices = @transform_5, window_bounds = array<i64: 2, 32>}, {pipeline_mode = #tpu.pipeline_mode<synchronous>, transform_indices = @transform_6, window_bounds = array<i64: 2, 1>}, {transform_indices = @transform_7, window_bounds = array<i64: 2, 128>}]} {
    %c0 = arith.constant 0 : index
    %c0_0 = arith.constant 0 : index
    %0 = vector.load %arg1[%c0, %c0_0] : memref<2x128xf32, #tpu.memory_space<vmem>>, vector<2x128xf32>
    %c0_1 = arith.constant 0 : index
    %c0_2 = arith.constant 0 : index
    %1 = vector.load %arg2[%c0_1, %c0_2] : memref<32x2xf32, #tpu.memory_space<vmem>>, vector<32x2xf32>
    %2 = vector.extract_strided_slice %1 {offsets = [0, 0], sizes = [32, 1], strides = [1, 1]} : vector<32x2xf32> to vector<32x1xf32>
    %3 = vector.extract_strided_slice %0 {offsets = [0, 0], sizes = [1, 128], strides = [1, 1]} : vector<2x128xf32> to vector<1x128xf32>
    %4 = vector.broadcast %2 : vector<32x1xf32> to vector<32x128xf32>
    %5 = vector.broadcast %3 : vector<1x128xf32> to vector<32x128xf32>
    %6 = arith.mulf %4, %5 : vector<32x128xf32>
    %7 = vector.extract_strided_slice %1 {offsets = [0, 1], sizes = [32, 1], strides = [1, 1]} : vector<32x2xf32> to vector<32x1xf32>
    %8 = vector.extract_strided_slice %0 {offsets = [1, 0], sizes = [1, 128], strides = [1, 1]} : vector<2x128xf32> to vector<1x128xf32>
    %9 = vector.broadcast %7 : vector<32x1xf32> to vector<32x128xf32>
    %10 = vector.broadcast %8 : vector<1x128xf32> to vector<32x128xf32>
    %11 = arith.mulf %9, %10 : vector<32x128xf32>
    %12 = arith.addf %6, %11 : vector<32x128xf32>
    %c0_3 = arith.constant 0 : index
    %c0_4 = arith.constant 0 : index
    %13 = vector.load %arg3[%c0_3, %c0_4] : memref<32x1xf32, #tpu.memory_space<vmem>>, vector<32x1xf32>
    %14 = vector.broadcast %13 : vector<32x1xf32> to vector<32x128xf32>
    %15 = arith.addf %12, %14 : vector<32x128xf32>
    %cst = arith.constant 0.000000e+00 : f32
    %16 = vector.broadcast %cst : f32 to vector<32x128xf32>
    %17 = arith.maximumf %15, %16 : vector<32x128xf32>
    %c0_5 = arith.constant 0 : index
    %c0_6 = arith.constant 0 : index
    %18 = vector.load %arg4[%c0_5, %c0_6] : memref<32x32xf32, #tpu.memory_space<vmem>>, vector<32x32xf32>
    %cst_7 = arith.constant dense<0.000000e+00> : vector<32x128xf32>
    %19 = tpu.matmul %18, %17, %cst_7 {dimension_numbers = #tpu.dot_dimension_numbers<[1], [0], [0], [1], [0, 0, 1, 1], [], []>} : vector<32x32xf32>, vector<32x128xf32>, vector<32x128xf32> -> vector<32x128xf32>
    %c0_8 = arith.constant 0 : index
    %c0_9 = arith.constant 0 : index
    %20 = vector.load %arg5[%c0_8, %c0_9] : memref<32x1xf32, #tpu.memory_space<vmem>>, vector<32x1xf32>
    %21 = vector.broadcast %20 : vector<32x1xf32> to vector<32x128xf32>
    %22 = arith.addf %19, %21 : vector<32x128xf32>
    %cst_10 = arith.constant 0.000000e+00 : f32
    %23 = vector.broadcast %cst_10 : f32 to vector<32x128xf32>
    %24 = arith.maximumf %22, %23 : vector<32x128xf32>
    %c0_11 = arith.constant 0 : index
    %c0_12 = arith.constant 0 : index
    %25 = vector.load %arg6[%c0_11, %c0_12] : memref<2x32xf32, #tpu.memory_space<vmem>>, vector<2x32xf32>
    %cst_13 = arith.constant dense<0.000000e+00> : vector<2x128xf32>
    %26 = tpu.matmul %25, %24, %cst_13 {dimension_numbers = #tpu.dot_dimension_numbers<[1], [0], [0], [1], [0, 0, 1, 1], [], []>} : vector<2x32xf32>, vector<32x128xf32>, vector<2x128xf32> -> vector<2x128xf32>
    %c0_14 = arith.constant 0 : index
    %c0_15 = arith.constant 0 : index
    %27 = vector.load %arg7[%c0_14, %c0_15] : memref<2x1xf32, #tpu.memory_space<vmem>>, vector<2x1xf32>
    %28 = vector.broadcast %27 : vector<2x1xf32> to vector<2x128xf32>
    %29 = arith.addf %26, %28 : vector<2x128xf32>
    %c0_16 = arith.constant 0 : index
    %c0_17 = arith.constant 0 : index
    %30 = vector.load %arg8[%c0_16, %c0_17] : memref<2x128xf32, #tpu.memory_space<vmem>>, vector<2x128xf32>
    tpu.vector_store %arg8[%c0_16, %c0_17], %29 {strides = array<i32>} : memref<2x128xf32, #tpu.memory_space<vmem>>, vector<2x128xf32>,
    return
  }
  func.func @transform_0(%arg0: i32) -> (i32, i32) {
    %c0_i32 = arith.constant 0 : i32
    %c0_i32_0 = arith.constant 0 : i32
    return %c0_i32, %arg0 : i32, i32
  }
  func.func @transform_1(%arg0: i32) -> (i32, i32) {
    %c0_i32 = arith.constant 0 : i32
    %c0_i32_0 = arith.constant 0 : i32
    %c0_i32_1 = arith.constant 0 : i32
    return %c0_i32, %c0_i32_0 : i32, i32
  }
  func.func @transform_2(%arg0: i32) -> (i32, i32) {
    %c0_i32 = arith.constant 0 : i32
    %c0_i32_0 = arith.constant 0 : i32
    %c0_i32_1 = arith.constant 0 : i32
    return %c0_i32, %c0_i32_0 : i32, i32
  }
  func.func @transform_3(%arg0: i32) -> (i32, i32) {
    %c0_i32 = arith.constant 0 : i32
    %c0_i32_0 = arith.constant 0 : i32
    %c0_i32_1 = arith.constant 0 : i32
    return %c0_i32, %c0_i32_0 : i32, i32
  }
  func.func @transform_4(%arg0: i32) -> (i32, i32) {
    %c0_i32 = arith.constant 0 : i32
    %c0_i32_0 = arith.constant 0 : i32
    %c0_i32_1 = arith.constant 0 : i32
    return %c0_i32, %c0_i32_0 : i32, i32
  }
  func.func @transform_5(%arg0: i32) -> (i32, i32) {
    %c0_i32 = arith.constant 0 : i32
    %c0_i32_0 = arith.constant 0 : i32
    %c0_i32_1 = arith.constant 0 : i32
    return %c0_i32, %c0_i32_0 : i32, i32
  }
  func.func @transform_6(%arg0: i32) -> (i32, i32) {
    %c0_i32 = arith.constant 0 : i32
    %c0_i32_0 = arith.constant 0 : i32
    %c0_i32_1 = arith.constant 0 : i32
    return %c0_i32, %c0_i32_0 : i32, i32
  }
  func.func @transform_7(%arg0: i32) -> (i32, i32) {
    %c0_i32 = arith.constant 0 : i32
    %c0_i32_0 = arith.constant 0 : i32
    return %c0_i32, %arg0 : i32, i32
  }
}

</mosaic_0001>

<llo_original>
// kernel: tpu_custom_call.1
$region0: #{tpu_custom_call.1}
  #allocation0 [shape = 'u32[]', space=smem, size = 0x4, offset = 0x4, fixed_abs, tag = 'smem constant byte address 0x4 - core index']
  #allocation1 [shape = 'u32[144,128]{1,0:T(1,128)}', space=vmem, size = 0x12000, scoped, tag = 'internal scratch']
  %s0 = inlined_call_operand.vmem [shape: f32[2,128], index: 0, kind: input, shape index: {}]
  %s1 = inlined_call_operand.vmem [shape: f32[32,2], index: 1, kind: input, shape index: {}]
  %s2 = inlined_call_operand.vmem [shape: f32[32,1], index: 2, kind: input, shape index: {}]
  %s3 = inlined_call_operand.vmem [shape: f32[32,32], index: 3, kind: input, shape index: {}]
  %s4 = inlined_call_operand.vmem [shape: f32[32,1], index: 4, kind: input, shape index: {}]
  %s5 = inlined_call_operand.vmem [shape: f32[2,32], index: 5, kind: input, shape index: {}]
  %s6 = inlined_call_operand.vmem [shape: f32[2,1], index: 6, kind: input, shape index: {}]
  %s7 = inlined_call_operand.hbm [shape: f32[2,128], index: 7, kind: output, shape index: {}]
  %s8 = sld [smem:[#allocation0]]
  $region38: #{tpu_custom_call.1} parent=0
    _
  %s10 = ssub.s32 1, %s8
  %s11 = scalar_select 0, %s10, %s8
  $region1: #{tpu_custom_call.1} parent=0
    #allocation2 [shape = 'u8[1024]{0}', space=vmem, size = 0x400, scoped, tag = 'output window, operand 0, single buffered']
    #allocation3 [shape = 's32[1]{0}', space=sflag, size = 0x4, scoped, tag = 'scoped memory for tpu_custom_call.1']
    %12 = vsyncpa [#allocation3], 0
    // Predicated region
    $region2: #{tpu_custom_call.1} parent=1 // pred_check
      _
    $region3: #{tpu_custom_call.1} parent=1 // pred_check_branch
      %14 = sbr.rel (0) target = $region5
    $region4: #{tpu_custom_call.1} parent=1 // pred_region
      _
    $region5: #{tpu_custom_call.1} parent=1 // pred_fallthru
      _
    // Predicated region
    $region6: #{tpu_custom_call.1} parent=1 // pred_check
      _
    $region7: #{tpu_custom_call.1} parent=1 // pred_check_branch
      %16 = sbr.rel (0) target = $region9
    $region8: #{tpu_custom_call.1} parent=1 // pred_region
      _
    $region9: #{tpu_custom_call.1} parent=1 // pred_fallthru
      _
    // Predicated region
    $region10: #{tpu_custom_call.1} parent=1 // pred_check
      _
    $region11: #{tpu_custom_call.1} parent=1 // pred_check_branch
      %18 = sbr.rel (0) target = $region13
    $region12: #{tpu_custom_call.1} parent=1 // pred_region
      _
    $region13: #{tpu_custom_call.1} parent=1 // pred_fallthru
      _
    // Predicated region
    $region14: #{tpu_custom_call.1} parent=1 // pred_check
      _
    $region15: #{tpu_custom_call.1} parent=1 // pred_check_branch
      %20 = sbr.rel (0) target = $region17
    $region16: #{tpu_custom_call.1} parent=1 // pred_region
      _
    $region17: #{tpu_custom_call.1} parent=1 // pred_fallthru
      _
    // Predicated region
    $region18: #{tpu_custom_call.1} parent=1 // pred_check
      _
    $region19: #{tpu_custom_call.1} parent=1 // pred_check_branch
      %22 = sbr.rel (0) target = $region21
    $region20: #{tpu_custom_call.1} parent=1 // pred_region
      _
    $region21: #{tpu_custom_call.1} parent=1 // pred_fallthru
      _
    // Predicated region
    $region22: #{tpu_custom_call.1} parent=1 // pred_check
      _
    $region23: #{tpu_custom_call.1} parent=1 // pred_check_branch
      %24 = sbr.rel (0) target = $region25
    $region24: #{tpu_custom_call.1} parent=1 // pred_region
      _
    $region25: #{tpu_custom_call.1} parent=1 // pred_fallthru
      _
    // Predicated region
    $region26: #{tpu_custom_call.1} parent=1 // pred_check
      _
    $region27: #{tpu_custom_call.1} parent=1 // pred_check_branch
      %26 = sbr.rel (0) target = $region29
    $region28: #{tpu_custom_call.1} parent=1 // pred_region
      _
    $region29: #{tpu_custom_call.1} parent=1 // pred_fallthru
      _
    %v27 = vld [vmem:[%s0] sm:$0x3]
    %v28 = vld [vmem:[%s1] sm:$0xff]
    %v29 = vld [vmem:[%s1 + $0x8] sm:$0xff]
    %v30 = vld [vmem:[%s1 + $0x10] sm:$0xff]
    %v31 = vld [vmem:[%s1 + $0x18] sm:$0xff]
    %33 = vset.pattern.permute.xlu0 0
    %34 = vperm.xlu0 %33, %v28
    %v35 = vpop.permute.xlu0 %34
    %38 = vset.pattern.permute.xlu0 0
    %39 = vperm.xlu0 %38, %v29
    %v40 = vpop.permute.xlu0 %39
    %43 = vset.pattern.permute.xlu0 0
    %44 = vperm.xlu0 %43, %v30
    %v45 = vpop.permute.xlu0 %44
    %48 = vset.pattern.permute.xlu0 0
    %49 = vperm.xlu0 %48, %v31
    %v50 = vpop.permute.xlu0 %49
    %v52 = vlaneseq
    %v53 = vshrl.u32 %v52, 7
    %v54 = vsub.s32 0, %v53
    %v55 = vrot.slane %v27, %v54
    %v56 = vmul.f32 %v35, %v55
    %v57 = vmul.f32 %v40, %v55
    %v58 = vmul.f32 %v45, %v55
    %v59 = vmul.f32 %v50, %v55
    %60 = vset.pattern.permute.xlu0 1
    %61 = vperm.xlu0 %60, %v28
    %v62 = vpop.permute.xlu0 %61
    %64 = vset.pattern.permute.xlu0 1
    %65 = vperm.xlu0 %64, %v29
    %v66 = vpop.permute.xlu0 %65
    %68 = vset.pattern.permute.xlu0 1
    %69 = vperm.xlu0 %68, %v30
    %v70 = vpop.permute.xlu0 %69
    %72 = vset.pattern.permute.xlu0 1
    %73 = vperm.xlu0 %72, %v31
    %v74 = vpop.permute.xlu0 %73
    %v76 = vlaneseq
    %v77 = vshrl.u32 %v76, 7
    %v78 = vsub.s32 1, %v77
    %v79 = vrot.slane %v27, %v78
    %v80 = vmul.f32 %v62, %v79
    %v81 = vmul.f32 %v66, %v79
    %v82 = vmul.f32 %v70, %v79
    %v83 = vmul.f32 %v74, %v79
    %v84 = vadd.f32 %v56, %v80
    %v85 = vadd.f32 %v57, %v81
    %v86 = vadd.f32 %v58, %v82
    %v87 = vadd.f32 %v59, %v83
    %v88 = vld [vmem:[%s2] sm:$0xff]
    %v89 = vld [vmem:[%s2 + $0x8] sm:$0xff]
    %v90 = vld [vmem:[%s2 + $0x10] sm:$0xff]
    %v91 = vld [vmem:[%s2 + $0x18] sm:$0xff]
    %93 = vset.pattern.permute.xlu0 0
    %94 = vperm.xlu0 %93, %v88
    %v95 = vpop.permute.xlu0 %94
    %98 = vset.pattern.permute.xlu0 0
    %99 = vperm.xlu0 %98, %v89
    %v100 = vpop.permute.xlu0 %99
    %103 = vset.pattern.permute.xlu0 0
    %104 = vperm.xlu0 %103, %v90
    %v105 = vpop.permute.xlu0 %104
    %108 = vset.pattern.permute.xlu0 0
    %109 = vperm.xlu0 %108, %v91
    %v110 = vpop.permute.xlu0 %109
    %v112 = vadd.f32 %v84, %v95
    %v113 = vadd.f32 %v85, %v100
    %v114 = vadd.f32 %v86, %v105
    %v115 = vadd.f32 %v87, %v110
    %v116 = vmax.f32 %v112, 0.0
    %v117 = vmax.f32 %v113, 0.0
    %v118 = vmax.f32 %v114, 0.0
    %v119 = vmax.f32 %v115, 0.0
    %v120 = vld [vmem:[%s3] sm:$0xff]
    %v121 = vld [vmem:[%s3 + $0x8] sm:$0xff]
    %v122 = vld [vmem:[%s3 + $0x10] sm:$0xff]
    %v123 = vld [vmem:[%s3 + $0x18] sm:$0xff]
    %v124 = vld [vmem:[%s4] sm:$0xff]
    %v125 = vld [vmem:[%s4 + $0x8] sm:$0xff]
    %v126 = vld [vmem:[%s4 + $0x10] sm:$0xff]
    %v127 = vld [vmem:[%s4 + $0x18] sm:$0xff]
    %129 = vset.pattern.permute.xlu0 0
    %130 = vperm.xlu0 %129, %v124
    %v131 = vpop.permute.xlu0 %130
    %134 = vset.pattern.permute.xlu0 0
    %135 = vperm.xlu0 %134, %v125
    %v136 = vpop.permute.xlu0 %135
    %139 = vset.pattern.permute.xlu0 0
    %140 = vperm.xlu0 %139, %v126
    %v141 = vpop.permute.xlu0 %140
    %144 = vset.pattern.permute.xlu0 0
    %145 = vperm.xlu0 %144, %v127
    %v146 = vpop.permute.xlu0 %145
    %vm148 = vcmask 261120
    %v150 = vsel %vm148, %v120, 0
    %v153 = vsel %vm148, %v121, 0
    %v156 = vsel %vm148, %v122, 0
    %v159 = vsel %vm148, %v123, 0
    %161 = vmatprep.subr.mxu0 0.0
    %162 = vmatpush1.msra.mxu0 0.0
    %163 = vmatprep.subr.mxu0 0.0
    %164 = vmatpush1.msra.mxu0 0.0
    %165 = vmatprep.subr.mxu0 0.0
    %166 = vmatpush1.msra.mxu0 0.0
    %167 = vmatprep.subr.mxu0 0.0
    %168 = vmatpush1.msra.mxu0 0.0
    %169 = vmatprep.subr.mxu0 0.0
    %170 = vmatpush1.msra.mxu0 0.0
    %171 = vmatprep.subr.mxu0 0.0
    %172 = vmatpush1.msra.mxu0 0.0
    %173 = vmatprep.subr.mxu0 0.0
    %174 = vmatpush1.msra.mxu0 0.0
    %175 = vmatprep.subr.mxu0 0.0
    %176 = vmatpush1.msra.mxu0 0.0
    %177 = vmatprep.subr.mxu0 0.0
    %178 = vmatpush1.msra.mxu0 0.0
    %179 = vmatprep.subr.mxu0 0.0
    %180 = vmatpush1.msra.mxu0 0.0
    %181 = vmatprep.subr.mxu0 0.0
    %182 = vmatpush1.msra.mxu0 0.0
    %183 = vmatprep.subr.mxu0 0.0
    %184 = vmatpush1.msra.mxu0 0.0
    %185 = vmatprep.subr.mxu0 0.0
    %186 = vmatpush1.msra.mxu0 %v119
    %187 = vmatprep.subr.mxu0 0.0
    %188 = vmatpush1.msra.mxu0 %v118
    %189 = vmatprep.subr.mxu0 0.0
    %190 = vmatpush1.msra.mxu0 %v117
    %191 = vmatprep.subr.mxu0 0.0
    %192 = vmatpush1.msra.mxu0 %v116
    %193 = vmatprep.subr.mxu0 0.0
    %194 = vmatpush2.msra.mxu0 0.0
    %195 = vmatprep.subr.mxu0 0.0
    %196 = vmatpush2.msra.mxu0 0.0
    %197 = vmatprep.subr.mxu0 0.0
    %198 = vmatpush2.msra.mxu0 0.0
    %199 = vmatprep.subr.mxu0 0.0
    %200 = vmatpush2.msra.mxu0 0.0
    %201 = vmatprep.subr.mxu0 0.0
    %202 = vmatpush2.msra.mxu0 0.0
    %203 = vmatprep.subr.mxu0 0.0
    %204 = vmatpush2.msra.mxu0 0.0
    %205 = vmatprep.subr.mxu0 0.0
    %206 = vmatpush2.msra.mxu0 0.0
    %207 = vmatprep.subr.mxu0 0.0
    %208 = vmatpush2.msra.mxu0 0.0
    %209 = vmatprep.subr.mxu0 0.0
    %210 = vmatpush2.msra.mxu0 0.0
    %211 = vmatprep.subr.mxu0 0.0
    %212 = vmatpush2.msra.mxu0 0.0
    %213 = vmatprep.subr.mxu0 0.0
    %214 = vmatpush2.msra.mxu0 0.0
    %215 = vmatprep.subr.mxu0 0.0
    %216 = vmatpush2.msra.mxu0 0.0
    %217 = vmatprep.subr.mxu0 0.0
    %218 = vmatpush2.msra.mxu0 0.0
    %219 = vmatprep.subr.mxu0 0.0
    %220 = vmatpush2.msra.mxu0 0.0
    %221 = vmatprep.subr.mxu0 0.0
    %222 = vmatpush2.msra.mxu0 0.0
    %223 = vmatprep.subr.mxu0 0.0
    %224 = vmatpush2.msra.mxu0 0.0
    %225 = vmatprep.mubr.f32.mxu0 0.0
    %226 = vmatmul.mubr.f32.gmra.mxu0 %v150
    %v227 = vpop.f32.mrf.mxu0
    %v228 = vadd.f32 %v131, %v227
    %v229 = vpop.f32.mrf.mxu0
    %230 = vmatprep.mubr.f32.mxu0 0.0
    %231 = vmatmul.mubr.f32.gmra.mxu0 %v153
    %v232 = vpop.f32.mrf.mxu0
    %v233 = vadd.f32 %v136, %v232
    %v234 = vpop.f32.mrf.mxu0
    %235 = vmatprep.mubr.f32.mxu0 0.0
    %236 = vmatmul.mubr.f32.gmra.mxu0 %v156
    %v237 = vpop.f32.mrf.mxu0
    %v238 = vadd.f32 %v141, %v237
    %v239 = vpop.f32.mrf.mxu0
    %240 = vmatprep.mubr.f32.mxu0 0.0
    %241 = vmatmul.mubr.f32.gmra.mxu0 %v159
    %v242 = vpop.f32.mrf.mxu0
    %v243 = vadd.f32 %v146, %v242
    %v244 = vpop.f32.mrf.mxu0
    %245 = vdwg.mxu0
    %v246 = vmax.f32 %v228, 0.0
    %v247 = vmax.f32 %v233, 0.0
    %v248 = vmax.f32 %v238, 0.0
    %v249 = vmax.f32 %v243, 0.0
    %v250 = vld [vmem:[%s5] sm:$0x3]
    %v251 = vld [vmem:[%s6] sm:$0x3]
    %253 = vset.pattern.permute.xlu0 0
    %254 = vperm.xlu0 %253, %v251
    %v255 = vpop.permute.xlu0 %254
    %v258 = vsel %vm148, %v250, 0
    %260 = vmatprep.subr.mxu0 0.0
    %261 = vmatpush1.msra.mxu0 0.0
    %262 = vmatprep.subr.mxu0 0.0
    %263 = vmatpush1.msra.mxu0 0.0
    %264 = vmatprep.subr.mxu0 0.0
    %265 = vmatpush1.msra.mxu0 0.0
    %266 = vmatprep.subr.mxu0 0.0
    %267 = vmatpush1.msra.mxu0 0.0
    %268 = vmatprep.subr.mxu0 0.0
    %269 = vmatpush1.msra.mxu0 0.0
    %270 = vmatprep.subr.mxu0 0.0
    %271 = vmatpush1.msra.mxu0 0.0
    %272 = vmatprep.subr.mxu0 0.0
    %273 = vmatpush1.msra.mxu0 0.0
    %274 = vmatprep.subr.mxu0 0.0
    %275 = vmatpush1.msra.mxu0 0.0
    %276 = vmatprep.subr.mxu0 0.0
    %277 = vmatpush1.msra.mxu0 0.0
    %278 = vmatprep.subr.mxu0 0.0
    %279 = vmatpush1.msra.mxu0 0.0
    %280 = vmatprep.subr.mxu0 0.0
    %281 = vmatpush1.msra.mxu0 0.0
    %282 = vmatprep.subr.mxu0 0.0
    %283 = vmatpush1.msra.mxu0 0.0
    %284 = vmatprep.subr.mxu0 0.0
    %285 = vmatpush1.msra.mxu0 %v249
    %286 = vmatprep.subr.mxu0 0.0
    %287 = vmatpush1.msra.mxu0 %v248
    %288 = vmatprep.subr.mxu0 0.0
    %289 = vmatpush1.msra.mxu0 %v247
    %290 = vmatprep.subr.mxu0 0.0
    %291 = vmatpush1.msra.mxu0 %v246
    %292 = vmatprep.subr.mxu0 0.0
    %293 = vmatpush2.msra.mxu0 0.0
    %294 = vmatprep.subr.mxu0 0.0
    %295 = vmatpush2.msra.mxu0 0.0
    %296 = vmatprep.subr.mxu0 0.0
    %297 = vmatpush2.msra.mxu0 0.0
    %298 = vmatprep.subr.mxu0 0.0
    %299 = vmatpush2.msra.mxu0 0.0
    %300 = vmatprep.subr.mxu0 0.0
    %301 = vmatpush2.msra.mxu0 0.0
    %302 = vmatprep.subr.mxu0 0.0
    %303 = vmatpush2.msra.mxu0 0.0
    %304 = vmatprep.subr.mxu0 0.0
    %305 = vmatpush2.msra.mxu0 0.0
    %306 = vmatprep.subr.mxu0 0.0
    %307 = vmatpush2.msra.mxu0 0.0
    %308 = vmatprep.subr.mxu0 0.0
    %309 = vmatpush2.msra.mxu0 0.0
    %310 = vmatprep.subr.mxu0 0.0
    %311 = vmatpush2.msra.mxu0 0.0
    %312 = vmatprep.subr.mxu0 0.0
    %313 = vmatpush2.msra.mxu0 0.0
    %314 = vmatprep.subr.mxu0 0.0
    %315 = vmatpush2.msra.mxu0 0.0
    %316 = vmatprep.subr.mxu0 0.0
    %317 = vmatpush2.msra.mxu0 0.0
    %318 = vmatprep.subr.mxu0 0.0
    %319 = vmatpush2.msra.mxu0 0.0
    %320 = vmatprep.subr.mxu0 0.0
    %321 = vmatpush2.msra.mxu0 0.0
    %322 = vmatprep.subr.mxu0 0.0
    %323 = vmatpush2.msra.mxu0 0.0
    %324 = vmatprep.mubr.f32.mxu0 0.0
    %325 = vmatmul.mubr.f32.gmra.mxu0 %v258
    %v326 = vpop.f32.mrf.mxu0
    %v327 = vadd.f32 %v255, %v326
    %v328 = vpop.f32.mrf.mxu0
    %329 = vdwg.mxu0
    %330 = vst [vmem:[#allocation2] sm:$0x3] %v327
    // Predicated region
    $region30: #{tpu_custom_call.1} parent=1 // pred_check
      _
    $region31: #{tpu_custom_call.1} parent=1 // pred_check_branch
      %332 = sbr.rel (0) target = $region33
    $region32: #{tpu_custom_call.1} parent=1 // pred_region
      %s334 = ssub.s32 32, 32
      %335 = vsyncadd [#allocation3], %s334
      %s337 = sshll.u32 [#allocation2], 4
      %s338 = int_to_ptr.vmem [resolvable:$true] %s337
      %340 = dma.vmem_to_hbm [thread:$0]  %s338, 32, %s7, [#allocation3]
    $region33: #{tpu_custom_call.1} parent=1 // pred_fallthru
      _
    // Predicated region
    $region34: #{tpu_custom_call.1} parent=1 // pred_check
      _
    $region35: #{tpu_custom_call.1} parent=1 // pred_check_branch
      %342 = sbr.rel (0) target = $region37
    $region36: #{tpu_custom_call.1} parent=1 // pred_region
      %343 = dma.done [#allocation3], 32
    $region37: #{tpu_custom_call.1} parent=1 // pred_fallthru
      _
    %344 = vsyncpa [#allocation3], 1

</llo_original>
